<compile_context>
chip_gen: v7x
topology: tpu7x:2x2x1
jax: 0.10.0
libtpu: 0.0.40
codegen_flags: <defaults>
</compile_context>

<pallas_src>
import functools

import jax
import jax.numpy as jnp
from jax.experimental import pallas as pl
from jax.experimental.pallas import tpu as pltpu


def _round_up(v, m):
    return (v + m - 1) // m * m


# ----------------------------------------------------------------------------
# Pallas kernel: whole GNN_Block forward for B_blk graphs per grid step.
# ----------------------------------------------------------------------------
def gnn_block_kernel(adj_ref, x_ref, w1_ref, b1_ref, w2_ref, b2_ref,
                     wl_ref, bl_ref, out_ref, *, pack_concat):
    f32, bf16 = jnp.float32, jnp.bfloat16
    Bb, Np, Cin = x_ref.shape
    Hp = w1_ref.shape[1]
    M = Bb * Np

    adj = adj_ref[...]                                   # [Bb, Np, Np] bf16

    # conv1: relu( A_hat @ (x @ W1) + b1 )  -- projection flattened over batch.
    x_flat = x_ref[...].reshape(M, Cin)
    xw1 = jnp.dot(x_flat, w1_ref[...],
                  preferred_element_type=f32).astype(bf16)        # [M, Hp]
    h1 = jnp.einsum('bij,bjk->bik', adj, xw1.reshape(Bb, Np, Hp),
                    preferred_element_type=f32).reshape(M, Hp)
    x1 = jnp.maximum(h1 + b1_ref[...], 0.0)                       # [M, Hp] f32
    x1b = x1.astype(bf16)

    # conv2: relu( A_hat @ (x1 @ W2) + b2 )
    # (in the packed layout W2's outputs live in lanes [H:2H))
    xw2 = jnp.dot(x1b, w2_ref[...],
                  preferred_element_type=f32).astype(bf16)        # [M, Hp]
    h2 = jnp.einsum('bij,bjk->bik', adj, xw2.reshape(Bb, Np, Hp),
                    preferred_element_type=f32).reshape(M, Hp)
    x2b = jnp.maximum(h2 + b2_ref[...], 0.0).astype(bf16)

    # lin(cat(x1, x2)):
    #   packed: x1 occupies lanes [0:H), x2 lanes [H:2H) -> concat is an add,
    #   and the fused Linear is a single 128-deep [Hp,Hp] matmul.
    if pack_concat:
        x12 = x1b + x2b                                           # [M, Hp]
    else:
        x12 = jnp.concatenate([x1b, x2b], axis=-1)                # [M, 2*Hp]
    out = jnp.dot(x12, wl_ref[...], preferred_element_type=f32) + bl_ref[...]
    out_ref[...] = out.reshape(Bb, Np, Hp).astype(out_ref.dtype)


# ----------------------------------------------------------------------------
# One-time parameter re-layout (hoisted out of the forward path).
# ----------------------------------------------------------------------------
def prepare_gnn_block_params(w1, b1, w2, b2, wlin, blin):
    """w1:[Cin,H] w2:[H,H] wlin:[H,2H] (torch Linear layout) -> padded params."""
    bf16, f32 = jnp.bfloat16, jnp.float32
    Cin, H = w1.shape
    Hp = _round_up(H, 128)
    pack = 2 * H <= Hp      # both halves of the concat fit in one 128-lane slab

    w1_p = jnp.zeros((Cin, Hp), bf16).at[:, :H].set(w1.astype(bf16))
    b1_p = jnp.zeros((1, Hp), f32).at[0, :H].set(b1.astype(f32))
    bl_p = jnp.zeros((1, Hp), f32).at[0, :H].set(blin.astype(f32))

    if pack:
        # Route conv2's output into lanes [H:2H) so cat(x1,x2) is a free add.
        w2_p = jnp.zeros((Hp, Hp), bf16).at[:H, H:2 * H].set(w2.astype(bf16))
        b2_p = jnp.zeros((1, Hp), f32).at[0, H:2 * H].set(b2.astype(f32))
        wl_p = (jnp.zeros((Hp, Hp), bf16)
                .at[:H, :H].set(wlin[:, :H].T.astype(bf16))      # acts on x1
                .at[H:2 * H, :H].set(wlin[:, H:].T.astype(bf16)))  # acts on x2
    else:
        w2_p = jnp.zeros((Hp, Hp), bf16).at[:H, :H].set(w2.astype(bf16))
        b2_p = jnp.zeros((1, Hp), f32).at[0, :H].set(b2.astype(f32))
        wl_p = (jnp.zeros((2 * Hp, Hp), bf16)
                .at[:H, :H].set(wlin[:, :H].T.astype(bf16))
                .at[Hp:Hp + H, :H].set(wlin[:, H:].T.astype(bf16)))

    return dict(w1=w1_p, b1=b1_p, w2=w2_p, b2=b2_p, wl=wl_p, bl=bl_p)


# ----------------------------------------------------------------------------
# Forward wrapper: batching, node-dim padding, bf16 casts, pallas_call.
# ----------------------------------------------------------------------------
@functools.partial(jax.jit, static_argnames=("h_out",))
def gnn_block_forward(adj, x, params, h_out):
    """adj:[B,N,N] normalized adjacency, x:[B,N,Cin] -> [B,N,h_out] f32."""
    f32, bf16 = jnp.float32, jnp.bfloat16
    B, N, Cin = x.shape
    Np = _round_up(N, 8)
    Hp = params["w1"].shape[1]
    pack_concat = params["wl"].shape[0] == Hp

    adj_b = adj.astype(bf16)
    x_b = x.astype(bf16)
    if Np != N:
        # NOTE: padded node rows of x1/x2 contain relu(bias); benign because
        # adj's padded columns are zero and padded output rows are sliced off.
        adj_b = jnp.zeros((B, Np, Np), bf16).at[:, :N, :N].set(adj_b)
        x_b = jnp.zeros((B, Np, Cin), bf16).at[:, :N, :].set(x_b)

    # Fold the batch into few big grid steps; keep >=2 steps (when B is even)
    # so v7x's two TensorCores both get work via dimension_semantics=parallel.
    num_steps = 2 if (B % 2 == 0 and B >= 2) else 1
    B_blk = B // num_steps

    wl_rows = params["wl"].shape[0]
    flops = 2 * B * Np * (Cin * Hp + Np * Hp + Hp * Hp + Np * Hp + wl_rows * Hp)
    bytes_accessed = (adj_b.size * 2 + x_b.size * 2
                      + sum(int(params[k].size) * 2 for k in ("w1", "w2", "wl"))
                      + sum(int(params[k].size) * 4 for k in ("b1", "b2", "bl"))
                      + B * Np * Hp * 4)

    def batched(shape):   # B_blk graphs per grid step
        return pl.BlockSpec((B_blk,) + shape[1:],
                            lambda s: (s,) + (0,) * (len(shape) - 1))

    def shared(a):        # weights/biases resident across the whole grid
        return pl.BlockSpec(a.shape, lambda s: (0,) * a.ndim)

    out = pl.pallas_call(
        functools.partial(gnn_block_kernel, pack_concat=pack_concat),
        out_shape=jax.ShapeDtypeStruct((B, Np, Hp), f32),
        grid=(num_steps,),
        in_specs=[batched(adj_b.shape), batched(x_b.shape),
                  shared(params["w1"]), shared(params["b1"]),
                  shared(params["w2"]), shared(params["b2"]),
                  shared(params["wl"]), shared(params["bl"])],
        out_specs=pl.BlockSpec((B_blk, Np, Hp), lambda s: (s, 0, 0)),
        compiler_params=pltpu.CompilerParams(
            dimension_semantics=("parallel",)),
        cost_estimate=pl.CostEstimate(flops=flops, transcendentals=0,
                                      bytes_accessed=bytes_accessed),
    )(adj_b, x_b, params["w1"], params["b1"], params["w2"], params["b2"],
      params["wl"], params["bl"])

    return out[:, :N, :h_out]


# ----------------------------------------------------------------------------
# Plain-JAX glue: densify edge_index into the GCN-normalized adjacency.
# ----------------------------------------------------------------------------
def gcn_normalized_adjacency(edge_index, num_nodes):
    src, dst = edge_index[0], edge_index[1]
    loop = jnp.arange(num_nodes, dtype=edge_index.dtype)
    src = jnp.concatenate([src, loop])
    dst = jnp.concatenate([dst, loop])
    ew = jnp.ones(src.shape[0], jnp.float32)
    deg = jnp.zeros(num_nodes, jnp.float32).at[dst].add(ew)
    dinv = jnp.where(deg > 0, 1.0 / jnp.sqrt(deg), 0.0)
    norm = dinv[src] * dinv[dst]
    # message flows src -> dst  =>  out[dst] += norm * x[src]
    adj = jnp.zeros((num_nodes, num_nodes), jnp.float32).at[dst, src].add(norm)
    return adj


def reference_forward(adj, x, w1, b1, w2, b2, wlin, blin):
    """Reference that mimics the kernel's bf16-operand / f32-accumulate path."""
    bf16, f32 = jnp.bfloat16, jnp.float32

    def mm(a, b):
        return jnp.einsum('...ij,...jk->...ik', a.astype(bf16), b.astype(bf16),
                          preferred_element_type=f32)

    x1 = jax.nn.relu(mm(adj, mm(x, w1)) + b1)
    x2 = jax.nn.relu(mm(adj, mm(x1, w2)) + b2)
    return mm(jnp.concatenate([x1, x2], -1), wlin.T) + blin


if __name__ == "__main__":
    key = jax.random.PRNGKey(0)
    B, N, C_IN, H = 4, 16, 8, 32      # graphs, nodes, in_channels, hidden_channels

    ks = jax.random.split(key, 8)
    x = jax.random.normal(ks[0], (B, N, C_IN), jnp.float32)

    # deterministic per-graph ring + chords topology (undirected)
    adjs = []
    for b in range(B):
        src = jnp.arange(N, dtype=jnp.int32)
        dst = (src + 1) % N
        chord_src = jnp.arange(0, N, 4, dtype=jnp.int32)
        chord_dst = (chord_src + 3 + 2 * b) % N
        s = jnp.concatenate([src, dst, chord_src, chord_dst])
        d = jnp.concatenate([dst, src, chord_dst, chord_src])
        edge_index = jnp.stack([s, d])    # [2, E]
        adjs.append(gcn_normalized_adjacency(edge_index, N))
    adj = jnp.stack(adjs)                 # [B, N, N]

    # deterministic parameter init (glorot-ish); torch Linear weight is (out, in)
    w1 = jax.random.normal(ks[1], (C_IN, H), jnp.float32) * (1.0 / jnp.sqrt(C_IN))
    b1 = jax.random.normal(ks[2], (H,), jnp.float32) * 0.01
    w2 = jax.random.normal(ks[3], (H, H), jnp.float32) * (1.0 / jnp.sqrt(H))
    b2 = jax.random.normal(ks[4], (H,), jnp.float32) * 0.01
    wlin = jax.random.normal(ks[5], (H, 2 * H), jnp.float32) * (1.0 / jnp.sqrt(2 * H))
    blin = jax.random.normal(ks[6], (H,), jnp.float32) * 0.01

    # One-time parameter re-layout (hoisted out of the forward path).
    params = jax.tree_util.tree_map(jax.block_until_ready,
                                    prepare_gnn_block_params(w1, b1, w2, b2, wlin, blin))

    out = gnn_block_forward(adj, x, params, h_out=H)
    out = jax.block_until_ready(out)

    ref = reference_forward(adj, x, w1, b1, w2, b2, wlin, blin)
    assert out.shape == (B, N, H)
    assert jnp.allclose(out, ref, atol=1e-2, rtol=1e-2), \
        float(jnp.max(jnp.abs(out - ref)))

    print("KERNEL_OK")
</pallas_src>

<mosaic_0001>
module attributes {stable_mosaic.version = 11 : i64} {
  func.func @gnn_block_kernel(%arg0: i32, %arg1: memref<2x16x16xbf16, #tpu.memory_space<vmem>>, %arg2: memref<2x16x8xbf16, #tpu.memory_space<vmem>>, %arg3: memref<8x128xbf16, #tpu.memory_space<vmem>>, %arg4: memref<1x128xf32, #tpu.memory_space<vmem>>, %arg5: memref<128x128xbf16, #tpu.memory_space<vmem>>, %arg6: memref<1x128xf32, #tpu.memory_space<vmem>>, %arg7: memref<128x128xbf16, #tpu.memory_space<vmem>>, %arg8: memref<1x128xf32, #tpu.memory_space<vmem>>, %arg9: memref<2x16x128xf32, #tpu.memory_space<vmem>>) attributes {dimension_semantics = [#tpu.dimension_semantics<parallel>], iteration_bounds = array<i64: 2>, scalar_prefetch = 0 : i64, scratch_operands = 0 : i64, tpu.core_type = #tpu.core_type<tc>, window_params = [{transform_indices = @transform_0, window_bounds = array<i64: 2, 16, 16>}, {transform_indices = @transform_1, window_bounds = array<i64: 2, 16, 8>}, {pipeline_mode = #tpu.pipeline_mode<synchronous>, transform_indices = @transform_2, window_bounds = array<i64: 8, 128>}, {pipeline_mode = #tpu.pipeline_mode<synchronous>, transform_indices = @transform_3, window_bounds = array<i64: 1, 128>}, {pipeline_mode = #tpu.pipeline_mode<synchronous>, transform_indices = @transform_4, window_bounds = array<i64: 128, 128>}, {pipeline_mode = #tpu.pipeline_mode<synchronous>, transform_indices = @transform_5, window_bounds = array<i64: 1, 128>}, {pipeline_mode = #tpu.pipeline_mode<synchronous>, transform_indices = @transform_6, window_bounds = array<i64: 128, 128>}, {pipeline_mode = #tpu.pipeline_mode<synchronous>, transform_indices = @transform_7, window_bounds = array<i64: 1, 128>}, {transform_indices = @transform_8, window_bounds = array<i64: 2, 16, 128>}]} {
    %c0 = arith.constant 0 : index
    %c0_0 = arith.constant 0 : index
    %c0_1 = arith.constant 0 : index
    %0 = vector.load %arg1[%c0, %c0_0, %c0_1] : memref<2x16x16xbf16, #tpu.memory_space<vmem>>, vector<2x16x16xbf16>
    %c0_2 = arith.constant 0 : index
    %c0_3 = arith.constant 0 : index
    %c0_4 = arith.constant 0 : index
    %1 = vector.load %arg2[%c0_2, %c0_3, %c0_4] : memref<2x16x8xbf16, #tpu.memory_space<vmem>>, vector<2x16x8xbf16>
    %2 = vector.shape_cast %1 : vector<2x16x8xbf16> to vector<32x8xbf16>
    %c0_5 = arith.constant 0 : index
    %c0_6 = arith.constant 0 : index
    %3 = vector.load %arg3[%c0_5, %c0_6] : memref<8x128xbf16, #tpu.memory_space<vmem>>, vector<8x128xbf16>
    %cst = arith.constant dense<0.000000e+00> : vector<32x128xf32>
    %4 = tpu.matmul %2, %3, %cst {dimension_numbers = #tpu.dot_dimension_numbers<[1], [0], [0], [1], [0, 0, 1, 1], [], []>} : vector<32x8xbf16>, vector<8x128xbf16>, vector<32x128xf32> -> vector<32x128xf32>
    %5 = arith.truncf %4 : vector<32x128xf32> to vector<32x128xbf16>
    %6 = vector.shape_cast %5 : vector<32x128xbf16> to vector<2x16x128xbf16>
    "tpu.trace_start"() <{level = 10 : i32, message = "bij,bjk->bik"}> : () -> ()
    %cst_7 = arith.constant dense<0.000000e+00> : vector<2x16x128xf32>
    %7 = tpu.matmul %0, %6, %cst_7 {dimension_numbers = #tpu.dot_dimension_numbers<[2], [1], [1], [2], [0, 0, 0, 1, 1, 2], [0], [0]>} : vector<2x16x16xbf16>, vector<2x16x128xbf16>, vector<2x16x128xf32> -> vector<2x16x128xf32>
    "tpu.trace_stop"() : () -> ()
    %8 = vector.shape_cast %7 : vector<2x16x128xf32> to vector<32x128xf32>
    %c0_8 = arith.constant 0 : index
    %c0_9 = arith.constant 0 : index
    %9 = vector.load %arg4[%c0_8, %c0_9] : memref<1x128xf32, #tpu.memory_space<vmem>>, vector<1x128xf32>
    %10 = vector.broadcast %9 : vector<1x128xf32> to vector<32x128xf32>
    %11 = arith.addf %8, %10 : vector<32x128xf32>
    %cst_10 = arith.constant 0.000000e+00 : f32
    %12 = vector.broadcast %cst_10 : f32 to vector<32x128xf32>
    %13 = arith.maximumf %11, %12 : vector<32x128xf32>
    %14 = arith.truncf %13 : vector<32x128xf32> to vector<32x128xbf16>
    %c0_11 = arith.constant 0 : index
    %c0_12 = arith.constant 0 : index
    %15 = vector.load %arg5[%c0_11, %c0_12] : memref<128x128xbf16, #tpu.memory_space<vmem>>, vector<128x128xbf16>
    %cst_13 = arith.constant dense<0.000000e+00> : vector<32x128xf32>
    %16 = tpu.matmul %14, %15, %cst_13 {dimension_numbers = #tpu.dot_dimension_numbers<[1], [0], [0], [1], [0, 0, 1, 1], [], []>} : vector<32x128xbf16>, vector<128x128xbf16>, vector<32x128xf32> -> vector<32x128xf32>
    %17 = arith.truncf %16 : vector<32x128xf32> to vector<32x128xbf16>
    %18 = vector.shape_cast %17 : vector<32x128xbf16> to vector<2x16x128xbf16>
    "tpu.trace_start"() <{level = 10 : i32, message = "bij,bjk->bik"}> : () -> ()
    %cst_14 = arith.constant dense<0.000000e+00> : vector<2x16x128xf32>
    %19 = tpu.matmul %0, %18, %cst_14 {dimension_numbers = #tpu.dot_dimension_numbers<[2], [1], [1], [2], [0, 0, 0, 1, 1, 2], [0], [0]>} : vector<2x16x16xbf16>, vector<2x16x128xbf16>, vector<2x16x128xf32> -> vector<2x16x128xf32>
    "tpu.trace_stop"() : () -> ()
    %20 = vector.shape_cast %19 : vector<2x16x128xf32> to vector<32x128xf32>
    %c0_15 = arith.constant 0 : index
    %c0_16 = arith.constant 0 : index
    %21 = vector.load %arg6[%c0_15, %c0_16] : memref<1x128xf32, #tpu.memory_space<vmem>>, vector<1x128xf32>
    %22 = vector.broadcast %21 : vector<1x128xf32> to vector<32x128xf32>
    %23 = arith.addf %20, %22 : vector<32x128xf32>
    %cst_17 = arith.constant 0.000000e+00 : f32
    %24 = vector.broadcast %cst_17 : f32 to vector<32x128xf32>
    %25 = arith.maximumf %23, %24 : vector<32x128xf32>
    %26 = arith.truncf %25 : vector<32x128xf32> to vector<32x128xbf16>
    %27 = arith.addf %14, %26 : vector<32x128xbf16>
    %c0_18 = arith.constant 0 : index
    %c0_19 = arith.constant 0 : index
    %28 = vector.load %arg7[%c0_18, %c0_19] : memref<128x128xbf16, #tpu.memory_space<vmem>>, vector<128x128xbf16>
    %cst_20 = arith.constant dense<0.000000e+00> : vector<32x128xf32>
    %29 = tpu.matmul %27, %28, %cst_20 {dimension_numbers = #tpu.dot_dimension_numbers<[1], [0], [0], [1], [0, 0, 1, 1], [], []>} : vector<32x128xbf16>, vector<128x128xbf16>, vector<32x128xf32> -> vector<32x128xf32>
    %c0_21 = arith.constant 0 : index
    %c0_22 = arith.constant 0 : index
    %30 = vector.load %arg8[%c0_21, %c0_22] : memref<1x128xf32, #tpu.memory_space<vmem>>, vector<1x128xf32>
    %31 = vector.broadcast %30 : vector<1x128xf32> to vector<32x128xf32>
    %32 = arith.addf %29, %31 : vector<32x128xf32>
    %33 = vector.shape_cast %32 : vector<32x128xf32> to vector<2x16x128xf32>
    %c0_23 = arith.constant 0 : index
    %c0_24 = arith.constant 0 : index
    %c0_25 = arith.constant 0 : index
    %34 = vector.load %arg9[%c0_23, %c0_24, %c0_25] : memref<2x16x128xf32, #tpu.memory_space<vmem>>, vector<2x16x128xf32>
    tpu.vector_store %arg9[%c0_23, %c0_24, %c0_25], %33 {strides = array<i32>} : memref<2x16x128xf32, #tpu.memory_space<vmem>>, vector<2x16x128xf32>,
    return
  }
  func.func @transform_0(%arg0: i32) -> (i32, i32, i32) {
    %c0_i32 = arith.constant 0 : i32
    %c0_i32_0 = arith.constant 0 : i32
    %c0_i32_1 = arith.constant 0 : i32
    return %arg0, %c0_i32, %c0_i32_0 : i32, i32, i32
  }
  func.func @transform_1(%arg0: i32) -> (i32, i32, i32) {
    %c0_i32 = arith.constant 0 : i32
    %c0_i32_0 = arith.constant 0 : i32
    %c0_i32_1 = arith.constant 0 : i32
    return %arg0, %c0_i32, %c0_i32_0 : i32, i32, i32
  }
  func.func @transform_2(%arg0: i32) -> (i32, i32) {
    %c0_i32 = arith.constant 0 : i32
    %c0_i32_0 = arith.constant 0 : i32
    %c0_i32_1 = arith.constant 0 : i32
    return %c0_i32, %c0_i32_0 : i32, i32
  }
  func.func @transform_3(%arg0: i32) -> (i32, i32) {
    %c0_i32 = arith.constant 0 : i32
    %c0_i32_0 = arith.constant 0 : i32
    %c0_i32_1 = arith.constant 0 : i32
    return %c0_i32, %c0_i32_0 : i32, i32
  }
  func.func @transform_4(%arg0: i32) -> (i32, i32) {
    %c0_i32 = arith.constant 0 : i32
    %c0_i32_0 = arith.constant 0 : i32
    %c0_i32_1 = arith.constant 0 : i32
    return %c0_i32, %c0_i32_0 : i32, i32
  }
  func.func @transform_5(%arg0: i32) -> (i32, i32) {
    %c0_i32 = arith.constant 0 : i32
    %c0_i32_0 = arith.constant 0 : i32
    %c0_i32_1 = arith.constant 0 : i32
    return %c0_i32, %c0_i32_0 : i32, i32
  }
  func.func @transform_6(%arg0: i32) -> (i32, i32) {
    %c0_i32 = arith.constant 0 : i32
    %c0_i32_0 = arith.constant 0 : i32
    %c0_i32_1 = arith.constant 0 : i32
    return %c0_i32, %c0_i32_0 : i32, i32
  }
  func.func @transform_7(%arg0: i32) -> (i32, i32) {
    %c0_i32 = arith.constant 0 : i32
    %c0_i32_0 = arith.constant 0 : i32
    %c0_i32_1 = arith.constant 0 : i32
    return %c0_i32, %c0_i32_0 : i32, i32
  }
  func.func @transform_8(%arg0: i32) -> (i32, i32, i32) {
    %c0_i32 = arith.constant 0 : i32
    %c0_i32_0 = arith.constant 0 : i32
    %c0_i32_1 = arith.constant 0 : i32
    return %arg0, %c0_i32, %c0_i32_0 : i32, i32, i32
  }
}

</mosaic_0001>

<llo_original>
// kernel: gnn_block_forward.1
$region0: #{gnn_block_forward.1}
  #allocation0 [shape = 'u32[]', space=smem, size = 0x4, offset = 0x4, fixed_abs, tag = 'smem constant byte address 0x4 - core index']
  #allocation1 [shape = 'u32[144,128]{1,0:T(1,128)}', space=vmem, size = 0x12000, scoped, tag = 'internal scratch']
  %s0 = inlined_call_operand.vmem [shape: bf16[4,16,16], index: 0, kind: input, shape index: {}]
  %s1 = inlined_call_operand.vmem [shape: bf16[4,16,8], index: 1, kind: input, shape index: {}]
  %s2 = inlined_call_operand.vmem [shape: bf16[8,128], index: 2, kind: input, shape index: {}]
  %s3 = inlined_call_operand.vmem [shape: f32[1,128], index: 3, kind: input, shape index: {}]
  %s4 = inlined_call_operand.vmem [shape: bf16[128,128], index: 4, kind: input, shape index: {}]
  %s5 = inlined_call_operand.vmem [shape: f32[1,128], index: 5, kind: input, shape index: {}]
  %s6 = inlined_call_operand.hbm [shape: bf16[128,128], index: 6, kind: input, shape index: {}]
  %s7 = inlined_call_operand.vmem [shape: f32[1,128], index: 7, kind: input, shape index: {}]
  %s8 = inlined_call_operand.hbm [shape: f32[4,16,128], index: 8, kind: output, shape index: {}]
  %s9 = sld [smem:[#allocation0]]
  $region69: #{gnn_block_forward.1} parent=0
    _
  %s11 = ssub.s32 1, %s9
  %s12 = scalar_select 0, %s11, %s9
  $region1: #{gnn_block_forward.1} parent=0
    #allocation2 [shape = 'u8[32768]{0}', space=vmem, size = 0x8000, scoped, tag = 'input window, operand 6, single buffered']
    #allocation3 [shape = 's32[2]{0}', space=sflag, size = 0x8, scoped, tag = 'scoped memory for gnn_block_forward.1']
    #allocation4 [shape = 's32[2]{0}', space=sflag, size = 0x8, scoped, tag = 'scoped memory for gnn_block_forward.1']
    #allocation5 [shape = 'u8[32768]{0}', space=vmem, size = 0x8000, scoped, tag = 'output window, operand 0']
    %13 = vsyncpa [#allocation3], 0
    %14 = vsyncpa [#allocation4], 0
    %s15 = scalar_lea.sflag [#allocation4], 1
    %16 = vsyncpa %s15, 0
    loop: start=0, step=1, limit=4
    $region2: #{gnn_block_forward.1} parent=1 // loop_pre_header
      _
    $region3: #{gnn_block_forward.1} parent=1 // loop_header
      %s18 = sphi 0, %s22
      %p19 = scmp.ge.s32.totalorder %s18, 4
      %s28 = sphi 0, %s30
      %s31 = sphi 0, %s28
      %s32 = sphi 0, %s31
      %s48 = sphi 0, %s32
      %s54 = sphi 0, %s56
      %s57 = sphi 0, %s54
      %s58 = sphi 0, %s57
      %s74 = sphi 0, %s58
      %s78 = sphi 0, %s78
      %s80 = sphi 0, %s78
      %s81 = sphi 0, %s80
      %s95 = sphi 0, %s81
      %s99 = sphi 0, %s99
      %s101 = sphi 0, %s99
      %s102 = sphi 0, %s101
      %s116 = sphi 0, %s102
      %s120 = sphi 0, %s120
      %s122 = sphi 0, %s120
      %s123 = sphi 0, %s122
      %s137 = sphi 0, %s123
      %s141 = sphi 0, %s141
      %s143 = sphi 0, %s141
      %s144 = sphi 0, %s143
      %s158 = sphi 0, %s144
      %s162 = sphi 0, %s162
      %s164 = sphi 0, %s162
      %s165 = sphi 0, %s164
      %s179 = sphi 0, %s165
      %s183 = sphi 0, %s183
      %s185 = sphi 0, %s183
      %s186 = sphi 0, %s185
      %s200 = sphi 0, %s186
      %s206 = sphi 0, %s208
      %s209 = sphi 0, %s206
      %s210 = sphi 0, %s209
      %s226 = sphi 0, %s210
    $region4: #{gnn_block_forward.1} parent=1 // loop_header_branch
      %21 = sbr.rel (%p19) target = $region8
    $region5: #{gnn_block_forward.1} parent=1 // loop_body
      %s23 = ssub.s32 %s18, 1
      %s24 = ssub.s32 %s18, 2
      %s25 = sadd.s32 %s18, 1
      %s26 = ssub.s32 %s18, %s25
      %p27 = scmp.eq.s32.totalorder %s26, 0
      %s29 = sadd.s32 %s28, 1
      %s30 = scalar_select %p27, %s28, %s29
      %p33 = pneg %p27
      %p34 = scmp.eq.s32.totalorder %s18, 1
      %p35 = por %p33, %p34
      %p36 = scmp.ne.s32.totalorder %s28, %s31
      %p37 = scmp.eq.s32.totalorder %s18, 0
      %p38 = por %p36, %p37
      %p39 = scmp.ne.s32.totalorder %s28, %s31
      %p40 = scmp.eq.s32.totalorder %s23, 1
      %p41 = por %p39, %p40
      %p42 = scmp.ne.s32.totalorder %s31, %s32
      %p43 = scmp.eq.s32.totalorder %s23, 0
      %p44 = por %p42, %p43
      %p45 = scmp.ne.s32.totalorder %s31, %s32
      %p46 = scmp.eq.s32.totalorder %s24, 1
      %p47 = por %p45, %p46
      %p49 = scmp.ne.s32.totalorder %s32, %s48
      %p50 = scmp.eq.s32.totalorder %s24, 0
      %p51 = por %p49, %p50
      %s52 = ssub.s32 %s18, %s25
      %p53 = scmp.eq.s32.totalorder %s52, 0
      %s55 = sadd.s32 %s54, 1
      %s56 = scalar_select %p53, %s54, %s55
      %p59 = pneg %p53
      %p60 = scmp.eq.s32.totalorder %s18, 1
      %p61 = por %p59, %p60
      %p62 = scmp.ne.s32.totalorder %s54, %s57
      %p63 = scmp.eq.s32.totalorder %s18, 0
      %p64 = por %p62, %p63
      %p65 = scmp.ne.s32.totalorder %s54, %s57
      %p66 = scmp.eq.s32.totalorder %s23, 1
      %p67 = por %p65, %p66
      %p68 = scmp.ne.s32.totalorder %s57, %s58
      %p69 = scmp.eq.s32.totalorder %s23, 0
      %p70 = por %p68, %p69
      %p71 = scmp.ne.s32.totalorder %s57, %s58
      %p72 = scmp.eq.s32.totalorder %s24, 1
      %p73 = por %p71, %p72
      %p75 = scmp.ne.s32.totalorder %s58, %s74
      %p76 = scmp.eq.s32.totalorder %s24, 0
      %p77 = por %p75, %p76
      %s79 = sadd.s32 %s78, 1
      %p82 = scmp.eq.s32.totalorder %s18, 1
      %p83 = scmp.ne.s32.totalorder %s78, %s80
      %p84 = scmp.eq.s32.totalorder %s18, 0
      %p85 = por %p83, %p84
      %p86 = scmp.ne.s32.totalorder %s78, %s80
      %p87 = scmp.eq.s32.totalorder %s23, 1
      %p88 = por %p86, %p87
      %p89 = scmp.ne.s32.totalorder %s80, %s81
      %p90 = scmp.eq.s32.totalorder %s23, 0
      %p91 = por %p89, %p90
      %p92 = scmp.ne.s32.totalorder %s80, %s81
      %p93 = scmp.eq.s32.totalorder %s24, 1
      %p94 = por %p92, %p93
      %p96 = scmp.ne.s32.totalorder %s81, %s95
      %p97 = scmp.eq.s32.totalorder %s24, 0
      %p98 = por %p96, %p97
      %s100 = sadd.s32 %s99, 1
      %p103 = scmp.eq.s32.totalorder %s18, 1
      %p104 = scmp.ne.s32.totalorder %s99, %s101
      %p105 = scmp.eq.s32.totalorder %s18, 0
      %p106 = por %p104, %p105
      %p107 = scmp.ne.s32.totalorder %s99, %s101
      %p108 = scmp.eq.s32.totalorder %s23, 1
      %p109 = por %p107, %p108
      %p110 = scmp.ne.s32.totalorder %s101, %s102
      %p111 = scmp.eq.s32.totalorder %s23, 0
      %p112 = por %p110, %p111
      %p113 = scmp.ne.s32.totalorder %s101, %s102
      %p114 = scmp.eq.s32.totalorder %s24, 1
      %p115 = por %p113, %p114
      %p117 = scmp.ne.s32.totalorder %s102, %s116
      %p118 = scmp.eq.s32.totalorder %s24, 0
      %p119 = por %p117, %p118
      %s121 = sadd.s32 %s120, 1
      %p124 = scmp.eq.s32.totalorder %s18, 1
      %p125 = scmp.ne.s32.totalorder %s120, %s122
      %p126 = scmp.eq.s32.totalorder %s18, 0
      %p127 = por %p125, %p126
      %p128 = scmp.ne.s32.totalorder %s120, %s122
      %p129 = scmp.eq.s32.totalorder %s23, 1
      %p130 = por %p128, %p129
      %p131 = scmp.ne.s32.totalorder %s122, %s123
      %p132 = scmp.eq.s32.totalorder %s23, 0
      %p133 = por %p131, %p132
      %p134 = scmp.ne.s32.totalorder %s122, %s123
      %p135 = scmp.eq.s32.totalorder %s24, 1
      %p136 = por %p134, %p135
      %p138 = scmp.ne.s32.totalorder %s123, %s137
      %p139 = scmp.eq.s32.totalorder %s24, 0
      %p140 = por %p138, %p139
      %s142 = sadd.s32 %s141, 1
      %p145 = scmp.eq.s32.totalorder %s18, 1
      %p146 = scmp.ne.s32.totalorder %s141, %s143
      %p147 = scmp.eq.s32.totalorder %s18, 0
      %p148 = por %p146, %p147
      %p149 = scmp.ne.s32.totalorder %s141, %s143
      %p150 = scmp.eq.s32.totalorder %s23, 1
      %p151 = por %p149, %p150
      %p152 = scmp.ne.s32.totalorder %s143, %s144
      %p153 = scmp.eq.s32.totalorder %s23, 0
      %p154 = por %p152, %p153
      %p155 = scmp.ne.s32.totalorder %s143, %s144
      %p156 = scmp.eq.s32.totalorder %s24, 1
      %p157 = por %p155, %p156
      %p159 = scmp.ne.s32.totalorder %s144, %s158
      %p160 = scmp.eq.s32.totalorder %s24, 0
      %p161 = por %p159, %p160
      %s163 = sadd.s32 %s162, 1
      %p166 = scmp.eq.s32.totalorder %s18, 1
      %p167 = scmp.ne.s32.totalorder %s162, %s164
      %p168 = scmp.eq.s32.totalorder %s18, 0
      %p169 = por %p167, %p168
      %p170 = scmp.ne.s32.totalorder %s162, %s164
      %p171 = scmp.eq.s32.totalorder %s23, 1
      %p172 = por %p170, %p171
      %p173 = scmp.ne.s32.totalorder %s164, %s165
      %p174 = scmp.eq.s32.totalorder %s23, 0
      %p175 = por %p173, %p174
      %p176 = scmp.ne.s32.totalorder %s164, %s165
      %p177 = scmp.eq.s32.totalorder %s24, 1
      %p178 = por %p176, %p177
      %p180 = scmp.ne.s32.totalorder %s165, %s179
      %p181 = scmp.eq.s32.totalorder %s24, 0
      %p182 = por %p180, %p181
      %s184 = sadd.s32 %s183, 1
      %p187 = scmp.eq.s32.totalorder %s18, 1
      %p188 = scmp.ne.s32.totalorder %s183, %s185
      %p189 = scmp.eq.s32.totalorder %s18, 0
      %p190 = por %p188, %p189
      %p191 = scmp.ne.s32.totalorder %s183, %s185
      %p192 = scmp.eq.s32.totalorder %s23, 1
      %p193 = por %p191, %p192
      %p194 = scmp.ne.s32.totalorder %s185, %s186
      %p195 = scmp.eq.s32.totalorder %s23, 0
      %p196 = por %p194, %p195
      %p197 = scmp.ne.s32.totalorder %s185, %s186
      %p198 = scmp.eq.s32.totalorder %s24, 1
      %p199 = por %p197, %p198
      %p201 = scmp.ne.s32.totalorder %s186, %s200
      %p202 = scmp.eq.s32.totalorder %s24, 0
      %p203 = por %p201, %p202
      %s204 = ssub.s32 %s18, %s25
      %p205 = scmp.eq.s32.totalorder %s204, 0
      %s207 = sadd.s32 %s206, 1
      %s208 = scalar_select %p205, %s206, %s207
      %p211 = pneg %p205
      %p212 = scmp.eq.s32.totalorder %s18, 1
      %p213 = por %p211, %p212
      %p214 = scmp.ne.s32.totalorder %s206, %s209
      %p215 = scmp.eq.s32.totalorder %s18, 0
      %p216 = por %p214, %p215
      %p217 = scmp.ne.s32.totalorder %s206, %s209
      %p218 = scmp.eq.s32.totalorder %s23, 1
      %p219 = por %p217, %p218
      %p220 = scmp.ne.s32.totalorder %s209, %s210
      %p221 = scmp.eq.s32.totalorder %s23, 0
      %p222 = por %p220, %p221
      %p223 = scmp.ne.s32.totalorder %s209, %s210
      %p224 = scmp.eq.s32.totalorder %s24, 1
      %p225 = por %p223, %p224
      %p227 = scmp.ne.s32.totalorder %s210, %s226
      %p228 = scmp.eq.s32.totalorder %s24, 0
      %p229 = por %p227, %p228
      %p230 = scmp.le.s32.totalorder 1, %s18
      %p231 = scmp.lt.s32.totalorder %s18, 3
      %p232 = pnand %p230, %p231
      %p233 = pneg %p232
      // Predicated region
      $region9: #{gnn_block_forward.1} parent=5 // pred_check
        _
      $region10: #{gnn_block_forward.1} parent=5 // pred_check_branch
        %235 = sbr.rel (%p232) target = $region12
      $region11: #{gnn_block_forward.1} parent=5 // pred_region
        %s236 = ssub.s32 %s18, 1
        // Predicated region
        $region13: #{gnn_block_forward.1} parent=11 // pred_check
          %p237 = pneg %p91
        $region14: #{gnn_block_forward.1} parent=11 // pred_check_branch
          %239 = sbr.rel (%p237) target = $region16
        $region15: #{gnn_block_forward.1} parent=11 // pred_region
          _
        $region16: #{gnn_block_forward.1} parent=11 // pred_fallthru
          _
        // Predicated region
        $region17: #{gnn_block_forward.1} parent=11 // pred_check
          %p240 = pneg %p112
        $region18: #{gnn_block_forward.1} parent=11 // pred_check_branch
          %242 = sbr.rel (%p240) target = $region20
        $region19: #{gnn_block_forward.1} parent=11 // pred_region
          _
        $region20: #{gnn_block_forward.1} parent=11 // pred_fallthru
          _
        // Predicated region
        $region21: #{gnn_block_forward.1} parent=11 // pred_check
          %p243 = pneg %p133
        $region22: #{gnn_block_forward.1} parent=11 // pred_check_branch
          %245 = sbr.rel (%p243) target = $region24
        $region23: #{gnn_block_forward.1} parent=11 // pred_region
          _
        $region24: #{gnn_block_forward.1} parent=11 // pred_fallthru
          _
        // Predicated region
        $region25: #{gnn_block_forward.1} parent=11 // pred_check
          %p246 = pneg %p154
        $region26: #{gnn_block_forward.1} parent=11 // pred_check_branch
          %248 = sbr.rel (%p246) target = $region28
        $region27: #{gnn_block_forward.1} parent=11 // pred_region
          _
        $region28: #{gnn_block_forward.1} parent=11 // pred_fallthru
          _
        // Predicated region
        $region29: #{gnn_block_forward.1} parent=11 // pred_check
          %p249 = pneg %p175
        $region30: #{gnn_block_forward.1} parent=11 // pred_check_branch
          %251 = sbr.rel (%p249) target = $region32
        $region31: #{gnn_block_forward.1} parent=11 // pred_region
          %s253 = ssub.s32 1024, 1024
          %254 = vsyncadd [#allocation3], %s253
          %s255 = sshll.u32 [#allocation2], 4
          %s256 = int_to_ptr.vmem [resolvable:$true] %s255
          %261 = dma.hbm_to_vmem [thread:$0]  %s6, 1024, %s256, [#allocation3], 64, 64, 4
        $region32: #{gnn_block_forward.1} parent=11 // pred_fallthru
          _
        // Predicated region
        $region33: #{gnn_block_forward.1} parent=11 // pred_check
          %p262 = pneg %p196
        $region34: #{gnn_block_forward.1} parent=11 // pred_check_branch
          %264 = sbr.rel (%p262) target = $region36
        $region35: #{gnn_block_forward.1} parent=11 // pred_region
          _
        $region36: #{gnn_block_forward.1} parent=11 // pred_fallthru
          _
      $region12: #{gnn_block_forward.1} parent=5 // pred_fallthru
        _
      %p265 = scmp.lt.s32.totalorder %s18, 2
      // Predicated region
      $region37: #{gnn_block_forward.1} parent=5 // pred_check
        %p266 = pneg %p265
      $region38: #{gnn_block_forward.1} parent=5 // pred_check_branch
        %268 = sbr.rel (%p266) target = $region40
      $region39: #{gnn_block_forward.1} parent=5 // pred_region
        // Predicated region
        $region41: #{gnn_block_forward.1} parent=39 // pred_check
          %p269 = pneg %p38
        $region42: #{gnn_block_forward.1} parent=39 // pred_check_branch
          %271 = sbr.rel (%p269) target = $region44
        $region43: #{gnn_block_forward.1} parent=39 // pred_region
          %s272 = smul.u32 2, %s18
          %p273 = scmp.lt.s32.totalorder %s272, 3
          %s274 = scalar_select %p273, %s272, 3
          %s275 = smul.addr %s274, 2
          %s276 = smul.addr %s275, 4
          %s277 = scalar_lea.vmem %s0, %s276
          %s278 = smul.u32 2, %s18
        $region44: #{gnn_block_forward.1} parent=39 // pred_fallthru
          _
        // Predicated region
        $region45: #{gnn_block_forward.1} parent=39 // pred_check
          %p279 = pneg %p64
        $region46: #{gnn_block_forward.1} parent=39 // pred_check_branch
          %281 = sbr.rel (%p279) target = $region48
        $region47: #{gnn_block_forward.1} parent=39 // pred_region
          %s282 = smul.u32 2, %s18
          %p283 = scmp.lt.s32.totalorder %s282, 3
          %s284 = scalar_select %p283, %s282, 3
          %s285 = smul.addr %s284, 2
          %s286 = smul.addr %s285, 4
          %s287 = scalar_lea.vmem %s1, %s286
          %s288 = smul.u32 2, %s18
        $region48: #{gnn_block_forward.1} parent=39 // pred_fallthru
          _
      $region40: #{gnn_block_forward.1} parent=5 // pred_fallthru
        _
      %p289 = scmp.le.s32.totalorder 1, %s18
      %p290 = scmp.lt.s32.totalorder %s18, 3
      %p291 = pnand %p289, %p290
      %p292 = pneg %p291
      // Predicated region
      $region49: #{gnn_block_forward.1} parent=5 // pred_check
        _
      $region50: #{gnn_block_forward.1} parent=5 // pred_check_branch
        %294 = sbr.rel (%p291) target = $region52
      $region51: #{gnn_block_forward.1} parent=5 // pred_region
        %s295 = ssub.s32 %s18, 1
        // Predicated region
        $region53: #{gnn_block_forward.1} parent=51 // pred_check
          %p296 = pneg %p175
        $region54: #{gnn_block_forward.1} parent=51 // pred_check_branch
          %298 = sbr.rel (%p296) target = $region56
        $region55: #{gnn_block_forward.1} parent=51 // pred_region
          %299 = dma.done [#allocation3], 1024
        $region56: #{gnn_block_forward.1} parent=51 // pred_fallthru
          _
        %s300 = smul.u32 2, %s23
        %p301 = scmp.lt.s32.totalorder %s300, 3
        %s302 = scalar_select %p301, %s300, 3
        %s303 = smul.addr %s302, 2
        %s304 = smul.addr %s303, 4
        %s305 = scalar_lea.vmem %s0, %s304
        %p306 = pneg %p44
        %p307 = pneg %p41
        %s308 = smul.u32 2, %s23
        %p309 = scmp.lt.s32.totalorder %s308, 3
        %s310 = scalar_select %p309, %s308, 3
        %s311 = smul.addr %s310, 2
        %s312 = smul.addr %s311, 4
        %s313 = scalar_lea.vmem %s1, %s312
        %p314 = pneg %p70
        %p315 = pneg %p67
        %p316 = pneg %p91
        %p317 = pneg %p88
        %p318 = pneg %p112
        %p319 = pneg %p109
        %p320 = pneg %p133
        %p321 = pneg %p130
        %p322 = pneg %p154
        %p323 = pneg %p151
        %p324 = pneg %p175
        %p325 = pneg %p172
        %p326 = pneg %p196
        %p327 = pneg %p193
        %p328 = pneg %p222
        %p329 = pneg %p219
        %s330 = sand.u32 %s209, 1
        %s331 = scalar_lea.sflag [#allocation4], %s330
        %s332 = sand.u32 %s209, 1
        %s333 = smul.addr %s332, 32
        %s334 = scalar_lea.vmem [#allocation5], %s333
        %s335 = smul.u32 2, %s23
        %p336 = scmp.lt.s32.totalorder %s335, 3
        %s337 = scalar_select %p336, %s335, 3
        %s338 = smul.addr %s337, 2
        %s339 = smul.addr %s338, 4
        %s340 = scalar_lea.vmem %s0, %s339
        %s341 = smul.u32 2, %s23
        %s342 = smul.u32 2, %s23
        %p343 = scmp.lt.s32.totalorder %s342, 3
        %s344 = scalar_select %p343, %s342, 3
        %s345 = smul.addr %s344, 2
        %s346 = smul.addr %s345, 4
        %s347 = scalar_lea.vmem %s1, %s346
        %s348 = smul.u32 2, %s23
        %s349 = smul.u32 2, %s23
        %v351 = vld [vmem:[%s340] sm:$0xf]
        %v352 = vld [vmem:[%s340 + $0x4] sm:$0xf]
        %v353 = vld [vmem:[%s340 + $0x8] sm:$0xf]
        %v354 = vld [vmem:[%s340 + $0xc] sm:$0xf]
        %v355 = vld [vmem:[%s347] sm:$0xf]
        %v356 = vld [vmem:[%s347 + $0x4] sm:$0xf]
        %v357 = vld [vmem:[%s347 + $0x8] sm:$0xf]
        %v358 = vld [vmem:[%s347 + $0xc] sm:$0xf]
        %v359 = vld [vmem:[%s2] sm:$0xf]
        %v364 = vunpack.c.l.b16 %v355
        %v365 = vunpack.c.l.b16 %v356
        %v366 = vunpack.c.l.b16 %v357
        %v367 = vunpack.c.l.b16 %v358
        %v368 = vpack.c.b16 %v365, %v364
        %v369 = vpack.c.b16 %v367, %v366
        %vm370 = vcmask 64512
        %v372 = vsel %vm370, %v368, 0
        %v375 = vsel %vm370, %v369, 0
        %vm377 = vcmask 1043456
        %v379 = vsel %vm377, %v359, 0
        %381 = vmatprep.subr.bf16.mxu0 0
        %382 = vmatpush1.bf16.msra.mxu0 %v379
        %383 = vmatprep.subr.bf16.mxu0 0
        %384 = vmatpush1.bf16.msra.mxu0 0
        %385 = vmatprep.subr.bf16.mxu0 0
        %386 = vmatpush1.bf16.msra.mxu0 0
        %387 = vmatprep.subr.bf16.mxu0 0
        %388 = vmatpush1.bf16.msra.mxu0 0
        %389 = vmatprep.subr.bf16.mxu0 0
        %390 = vmatpush1.bf16.msra.mxu0 0
        %391 = vmatprep.subr.bf16.mxu0 0
        %392 = vmatpush1.bf16.msra.mxu0 0
        %393 = vmatprep.subr.bf16.mxu0 0
        %394 = vmatpush1.bf16.msra.mxu0 0
        %395 = vmatprep.subr.bf16.mxu0 0
        %396 = vmatpush1.bf16.msra.mxu0 0
        %397 = vmatprep.subr.bf16.mxu0 0
        %398 = vmatpush1.bf16.msra.mxu0 0
        %399 = vmatprep.subr.bf16.mxu0 0
        %400 = vmatpush1.bf16.msra.mxu0 0
        %401 = vmatprep.subr.bf16.mxu0 0
        %402 = vmatpush1.bf16.msra.mxu0 0
        %403 = vmatprep.subr.bf16.mxu0 0
        %404 = vmatpush1.bf16.msra.mxu0 0
        %405 = vmatprep.subr.bf16.mxu0 0
        %406 = vmatpush1.bf16.msra.mxu0 0
        %407 = vmatprep.subr.bf16.mxu0 0
        %408 = vmatpush1.bf16.msra.mxu0 0
        %409 = vmatprep.subr.bf16.mxu0 0
        %410 = vmatpush1.bf16.msra.mxu0 0
        %411 = vmatprep.subr.bf16.mxu0 0
        %412 = vmatpush1.bf16.msra.mxu0 0
        %413 = vmatprep.mubr.bf16.mxu0 0
        %414 = vmatmul.mubr.bf16.gmra.mrb[0].mxu0 %v372
        %v415 = vpop.f32.mrb[0].mxu0
        %v416 = vadd.f32 0.0, %v415
        %v417 = vpop.f32.mrb[0].mxu0
        %v418 = vpop.f32.mrb[0].mxu0
        %v419 = vadd.f32 0.0, %v418
        %v420 = vpop.f32.mrb[0].mxu0
        %421 = vmatprep.mubr.bf16.mxu0 0
        %422 = vmatmul.mubr.bf16.gmra.mrb[0].mxu0 %v375
        %v423 = vpop.f32.mrb[0].mxu0
        %v424 = vadd.f32 0.0, %v423
        %v425 = vpop.f32.mrb[0].mxu0
        %v426 = vpop.f32.mrb[0].mxu0
        %v427 = vadd.f32 0.0, %v426
        %v428 = vpop.f32.mrb[0].mxu0
        %429 = vdwg.mxu0
        %v430 = vpack.c.bf16 %v419, %v416
        %v431 = vpack.c.bf16 %v427, %v424
        %v434 = vunpack.c.l.b16 %v351
        %v435 = vunpack.c.l.b16 %v352
        %v436 = vpack.c.b16 %v435, %v434
        %vm437 = vcmask 130048
        %v439 = vsel %vm437, %v436, 0
        %441 = vmatprep.subr.bf16.mxu0 0
        %442 = vmatpush1.bf16.msra.mxu0 %v430
        %443 = vmatprep.subr.bf16.mxu0 0
        %444 = vmatpush1.bf16.msra.mxu0 0
        %445 = vmatprep.subr.bf16.mxu0 0
        %446 = vmatpush1.bf16.msra.mxu0 0
        %447 = vmatprep.subr.bf16.mxu0 0
        %448 = vmatpush1.bf16.msra.mxu0 0
        %449 = vmatprep.subr.bf16.mxu0 0
        %450 = vmatpush1.bf16.msra.mxu0 0
        %451 = vmatprep.subr.bf16.mxu0 0
        %452 = vmatpush1.bf16.msra.mxu0 0
        %453 = vmatprep.subr.bf16.mxu0 0
        %454 = vmatpush1.bf16.msra.mxu0 0
        %455 = vmatprep.subr.bf16.mxu0 0
        %456 = vmatpush1.bf16.msra.mxu0 0
        %457 = vmatprep.subr.bf16.mxu0 0
        %458 = vmatpush1.bf16.msra.mxu0 0
        %459 = vmatprep.subr.bf16.mxu0 0
        %460 = vmatpush1.bf16.msra.mxu0 0
        %461 = vmatprep.subr.bf16.mxu0 0
        %462 = vmatpush1.bf16.msra.mxu0 0
        %463 = vmatprep.subr.bf16.mxu0 0
        %464 = vmatpush1.bf16.msra.mxu0 0
        %465 = vmatprep.subr.bf16.mxu0 0
        %466 = vmatpush1.bf16.msra.mxu0 0
        %467 = vmatprep.subr.bf16.mxu0 0
        %468 = vmatpush1.bf16.msra.mxu0 0
        %469 = vmatprep.subr.bf16.mxu0 0
        %470 = vmatpush1.bf16.msra.mxu0 0
        %471 = vmatprep.subr.bf16.mxu0 0
        %472 = vmatpush1.bf16.msra.mxu0 0
        %473 = vmatprep.mubr.bf16.mxu0 0
        %474 = vmatmul.mubr.bf16.gmra.mrb[0].mxu0 %v439
        %v475 = vpop.f32.mrb[0].mxu0
        %v476 = vadd.f32 0.0, %v475
        %v477 = vpop.f32.mrb[0].mxu0
        %v478 = vpop.f32.mrb[0].mxu0
        %v479 = vadd.f32 0.0, %v478
        %v480 = vpop.f32.mrb[0].mxu0
        %481 = vdwg.mxu0
        %v484 = vunpack.c.l.b16 %v353
        %v485 = vunpack.c.l.b16 %v354
        %v486 = vpack.c.b16 %v485, %v484
        %v488 = vsel %vm437, %v486, 0
        %490 = vmatprep.subr.bf16.mxu0 0
        %491 = vmatpush1.bf16.msra.mxu0 %v431
        %492 = vmatprep.subr.bf16.mxu0 0
        %493 = vmatpush1.bf16.msra.mxu0 0
        %494 = vmatprep.subr.bf16.mxu0 0
        %495 = vmatpush1.bf16.msra.mxu0 0
        %496 = vmatprep.subr.bf16.mxu0 0
        %497 = vmatpush1.bf16.msra.mxu0 0
        %498 = vmatprep.subr.bf16.mxu0 0
        %499 = vmatpush1.bf16.msra.mxu0 0
        %500 = vmatprep.subr.bf16.mxu0 0
        %501 = vmatpush1.bf16.msra.mxu0 0
        %502 = vmatprep.subr.bf16.mxu0 0
        %503 = vmatpush1.bf16.msra.mxu0 0
        %504 = vmatprep.subr.bf16.mxu0 0
        %505 = vmatpush1.bf16.msra.mxu0 0
        %506 = vmatprep.subr.bf16.mxu0 0
        %507 = vmatpush1.bf16.msra.mxu0 0
        %508 = vmatprep.subr.bf16.mxu0 0
        %509 = vmatpush1.bf16.msra.mxu0 0
        %510 = vmatprep.subr.bf16.mxu0 0
        %511 = vmatpush1.bf16.msra.mxu0 0
        %512 = vmatprep.subr.bf16.mxu0 0
        %513 = vmatpush1.bf16.msra.mxu0 0
        %514 = vmatprep.subr.bf16.mxu0 0
        %515 = vmatpush1.bf16.msra.mxu0 0
        %516 = vmatprep.subr.bf16.mxu0 0
        %517 = vmatpush1.bf16.msra.mxu0 0
        %518 = vmatprep.subr.bf16.mxu0 0
        %519 = vmatpush1.bf16.msra.mxu0 0
        %520 = vmatprep.subr.bf16.mxu0 0
        %521 = vmatpush1.bf16.msra.mxu0 0
        %522 = vmatprep.mubr.bf16.mxu0 0
        %523 = vmatmul.mubr.bf16.gmra.mrb[0].mxu0 %v488
        %v524 = vpop.f32.mrb[0].mxu0
        %v525 = vadd.f32 0.0, %v524
        %v526 = vpop.f32.mrb[0].mxu0
        %v527 = vpop.f32.mrb[0].mxu0
        %v528 = vadd.f32 0.0, %v527
        %v529 = vpop.f32.mrb[0].mxu0
        %530 = vdwg.mxu0
        %v531 = vld [vmem:[%s3] sm:$0x1]
        %v533 = vlaneseq
        %v534 = vshrl.u32 %v533, 7
        %v535 = vsub.s32 0, %v534
        %v536 = vrot.slane %v531, %v535
        %v538 = vadd.f32 %v476, %v536
        %v539 = vadd.f32 %v479, %v536
        %v540 = vadd.f32 %v525, %v536
        %v541 = vadd.f32 %v528, %v536
        %v542 = vmax.f32 %v538, 0.0
        %v543 = vmax.f32 %v539, 0.0
        %v544 = vmax.f32 %v540, 0.0
        %v545 = vmax.f32 %v541, 0.0
        %v546 = vpack.c.bf16 %v543, %v542
        %v547 = vpack.c.bf16 %v545, %v544
        %v548 = vld [vmem:[%s4] sm:$0xf]
        %v549 = vld [vmem:[%s4 + $0x4] sm:$0xf]
        %v550 = vld [vmem:[%s4 + $0x8] sm:$0xf]
        %v551 = vld [vmem:[%s4 + $0xc] sm:$0xf]
        %v552 = vld [vmem:[%s4 + $0x10] sm:$0xf]
        %v553 = vld [vmem:[%s4 + $0x14] sm:$0xf]
        %v554 = vld [vmem:[%s4 + $0x18] sm:$0xf]
        %v555 = vld [vmem:[%s4 + $0x1c] sm:$0xf]
        %v556 = vld [vmem:[%s4 + $0x20] sm:$0xf]
        %v557 = vld [vmem:[%s4 + $0x24] sm:$0xf]
        %v558 = vld [vmem:[%s4 + $0x28] sm:$0xf]
        %v559 = vld [vmem:[%s4 + $0x2c] sm:$0xf]
        %v560 = vld [vmem:[%s4 + $0x30] sm:$0xf]
        %v561 = vld [vmem:[%s4 + $0x34] sm:$0xf]
        %v562 = vld [vmem:[%s4 + $0x38] sm:$0xf]
        %v563 = vld [vmem:[%s4 + $0x3c] sm:$0xf]
        %v580 = vunpack.c.l.b16 %v548
        %v581 = vunpack.c.l.b16 %v549
        %v582 = vunpack.c.l.b16 %v550
        %v583 = vunpack.c.l.b16 %v551
        %v584 = vunpack.c.l.b16 %v552
        %v585 = vunpack.c.l.b16 %v553
        %v586 = vunpack.c.l.b16 %v554
        %v587 = vunpack.c.l.b16 %v555
        %v588 = vunpack.c.l.b16 %v556
        %v589 = vunpack.c.l.b16 %v557
        %v590 = vunpack.c.l.b16 %v558
        %v591 = vunpack.c.l.b16 %v559
        %v592 = vunpack.c.l.b16 %v560
        %v593 = vunpack.c.l.b16 %v561
        %v594 = vunpack.c.l.b16 %v562
        %v595 = vunpack.c.l.b16 %v563
        %v596 = vpack.c.b16 %v581, %v580
        %v597 = vpack.c.b16 %v583, %v582
        %v598 = vpack.c.b16 %v585, %v584
        %v599 = vpack.c.b16 %v587, %v586
        %v600 = vpack.c.b16 %v589, %v588
        %v601 = vpack.c.b16 %v591, %v590
        %v602 = vpack.c.b16 %v593, %v592
        %v603 = vpack.c.b16 %v595, %v594
        %612 = vmatprep.subr.bf16.mxu0 0
        %613 = vmatpush1.bf16.msra.mxu0 %v596
        %614 = vmatprep.subr.bf16.mxu0 0
        %615 = vmatpush1.bf16.msra.mxu0 %v597
        %616 = vmatprep.subr.bf16.mxu0 0
        %617 = vmatpush1.bf16.msra.mxu0 %v598
        %618 = vmatprep.subr.bf16.mxu0 0
        %619 = vmatpush1.bf16.msra.mxu0 %v599
        %620 = vmatprep.subr.bf16.mxu0 0
        %621 = vmatpush1.bf16.msra.mxu0 %v600
        %622 = vmatprep.subr.bf16.mxu0 0
        %623 = vmatpush1.bf16.msra.mxu0 %v601
        %624 = vmatprep.subr.bf16.mxu0 0
        %625 = vmatpush1.bf16.msra.mxu0 %v602
        %626 = vmatprep.subr.bf16.mxu0 0
        %627 = vmatpush1.bf16.msra.mxu0 %v603
        %628 = vmatprep.subr.bf16.mxu0 0
        %629 = vmatpush1.bf16.msra.mxu0 0
        %630 = vmatprep.subr.bf16.mxu0 0
        %631 = vmatpush1.bf16.msra.mxu0 0
        %632 = vmatprep.subr.bf16.mxu0 0
        %633 = vmatpush1.bf16.msra.mxu0 0
        %634 = vmatprep.subr.bf16.mxu0 0
        %635 = vmatpush1.bf16.msra.mxu0 0
        %636 = vmatprep.subr.bf16.mxu0 0
        %637 = vmatpush1.bf16.msra.mxu0 0
        %638 = vmatprep.subr.bf16.mxu0 0
        %639 = vmatpush1.bf16.msra.mxu0 0
        %640 = vmatprep.subr.bf16.mxu0 0
        %641 = vmatpush1.bf16.msra.mxu0 0
        %642 = vmatprep.subr.bf16.mxu0 0
        %643 = vmatpush1.bf16.msra.mxu0 0
        %644 = vmatprep.mubr.bf16.mxu0 0
        %645 = vmatmul.mubr.bf16.gmra.mrb[0].mxu0 %v546
        %v646 = vpop.f32.mrb[0].mxu0
        %v647 = vadd.f32 0.0, %v646
        %v648 = vpop.f32.mrb[0].mxu0
        %v649 = vpop.f32.mrb[0].mxu0
        %v650 = vadd.f32 0.0, %v649
        %v651 = vpop.f32.mrb[0].mxu0
        %652 = vmatprep.mubr.bf16.mxu0 0
        %653 = vmatmul.mubr.bf16.gmra.mrb[0].mxu0 %v547
        %v654 = vpop.f32.mrb[0].mxu0
        %v655 = vadd.f32 0.0, %v654
        %v656 = vpop.f32.mrb[0].mxu0
        %v657 = vpop.f32.mrb[0].mxu0
        %v658 = vadd.f32 0.0, %v657
        %v659 = vpop.f32.mrb[0].mxu0
        %660 = vdwg.mxu0
        %v661 = vpack.c.bf16 %v650, %v647
        %v662 = vpack.c.bf16 %v658, %v655
        %663 = vmatprep.subr.bf16.mxu0 0
        %664 = vmatpush1.bf16.msra.mxu0 %v661
        %665 = vmatprep.subr.bf16.mxu0 0
        %666 = vmatpush1.bf16.msra.mxu0 0
        %667 = vmatprep.subr.bf16.mxu0 0
        %668 = vmatpush1.bf16.msra.mxu0 0
        %669 = vmatprep.subr.bf16.mxu0 0
        %670 = vmatpush1.bf16.msra.mxu0 0
        %671 = vmatprep.subr.bf16.mxu0 0
        %672 = vmatpush1.bf16.msra.mxu0 0
        %673 = vmatprep.subr.bf16.mxu0 0
        %674 = vmatpush1.bf16.msra.mxu0 0
        %675 = vmatprep.subr.bf16.mxu0 0
        %676 = vmatpush1.bf16.msra.mxu0 0
        %677 = vmatprep.subr.bf16.mxu0 0
        %678 = vmatpush1.bf16.msra.mxu0 0
        %679 = vmatprep.subr.bf16.mxu0 0
        %680 = vmatpush1.bf16.msra.mxu0 0
        %681 = vmatprep.subr.bf16.mxu0 0
        %682 = vmatpush1.bf16.msra.mxu0 0
        %683 = vmatprep.subr.bf16.mxu0 0
        %684 = vmatpush1.bf16.msra.mxu0 0
        %685 = vmatprep.subr.bf16.mxu0 0
        %686 = vmatpush1.bf16.msra.mxu0 0
        %687 = vmatprep.subr.bf16.mxu0 0
        %688 = vmatpush1.bf16.msra.mxu0 0
        %689 = vmatprep.subr.bf16.mxu0 0
        %690 = vmatpush1.bf16.msra.mxu0 0
        %691 = vmatprep.subr.bf16.mxu0 0
        %692 = vmatpush1.bf16.msra.mxu0 0
        %693 = vmatprep.subr.bf16.mxu0 0
        %694 = vmatpush1.bf16.msra.mxu0 0
        %695 = vmatprep.mubr.bf16.mxu0 0
        %696 = vmatmul.mubr.bf16.gmra.mrb[0].mxu0 %v439
        %v697 = vpop.f32.mrb[0].mxu0
        %v698 = vadd.f32 0.0, %v697
        %v699 = vpop.f32.mrb[0].mxu0
        %v700 = vpop.f32.mrb[0].mxu0
        %v701 = vadd.f32 0.0, %v700
        %v702 = vpop.f32.mrb[0].mxu0
        %703 = vdwg.mxu0
        %704 = vmatprep.subr.bf16.mxu0 0
        %705 = vmatpush1.bf16.msra.mxu0 %v662
        %706 = vmatprep.subr.bf16.mxu0 0
        %707 = vmatpush1.bf16.msra.mxu0 0
        %708 = vmatprep.subr.bf16.mxu0 0
        %709 = vmatpush1.bf16.msra.mxu0 0
        %710 = vmatprep.subr.bf16.mxu0 0
        %711 = vmatpush1.bf16.msra.mxu0 0
        %712 = vmatprep.subr.bf16.mxu0 0
        %713 = vmatpush1.bf16.msra.mxu0 0
        %714 = vmatprep.subr.bf16.mxu0 0
        %715 = vmatpush1.bf16.msra.mxu0 0
        %716 = vmatprep.subr.bf16.mxu0 0
        %717 = vmatpush1.bf16.msra.mxu0 0
        %718 = vmatprep.subr.bf16.mxu0 0
        %719 = vmatpush1.bf16.msra.mxu0 0
        %720 = vmatprep.subr.bf16.mxu0 0
        %721 = vmatpush1.bf16.msra.mxu0 0
        %722 = vmatprep.subr.bf16.mxu0 0
        %723 = vmatpush1.bf16.msra.mxu0 0
        %724 = vmatprep.subr.bf16.mxu0 0
        %725 = vmatpush1.bf16.msra.mxu0 0
        %726 = vmatprep.subr.bf16.mxu0 0
        %727 = vmatpush1.bf16.msra.mxu0 0
        %728 = vmatprep.subr.bf16.mxu0 0
        %729 = vmatpush1.bf16.msra.mxu0 0
        %730 = vmatprep.subr.bf16.mxu0 0
        %731 = vmatpush1.bf16.msra.mxu0 0
        %732 = vmatprep.subr.bf16.mxu0 0
        %733 = vmatpush1.bf16.msra.mxu0 0
        %734 = vmatprep.subr.bf16.mxu0 0
        %735 = vmatpush1.bf16.msra.mxu0 0
        %736 = vmatprep.mubr.bf16.mxu0 0
        %737 = vmatmul.mubr.bf16.gmra.mrb[0].mxu0 %v488
        %v738 = vpop.f32.mrb[0].mxu0
        %v739 = vadd.f32 0.0, %v738
        %v740 = vpop.f32.mrb[0].mxu0
        %v741 = vpop.f32.mrb[0].mxu0
        %v742 = vadd.f32 0.0, %v741
        %v743 = vpop.f32.mrb[0].mxu0
        %744 = vdwg.mxu0
        %v745 = vld [vmem:[%s5] sm:$0x1]
        %v747 = vlaneseq
        %v748 = vshrl.u32 %v747, 7
        %v749 = vsub.s32 0, %v748
        %v750 = vrot.slane %v745, %v749
        %v752 = vadd.f32 %v698, %v750
        %v753 = vadd.f32 %v701, %v750
        %v754 = vadd.f32 %v739, %v750
        %v755 = vadd.f32 %v742, %v750
        %v756 = vmax.f32 %v752, 0.0
        %v757 = vmax.f32 %v753, 0.0
        %v758 = vmax.f32 %v754, 0.0
        %v759 = vmax.f32 %v755, 0.0
        %v760 = vpack.c.bf16 %v757, %v756
        %v761 = vpack.c.bf16 %v759, %v758
        %v762 = vadd.bf16 %v546, %v760
        %v763 = vadd.bf16 %v547, %v761
        %v764 = vld [vmem:[#allocation2] sm:$0xf]
        %v765 = vld [vmem:[#allocation2 + $0x4] sm:$0xf]
        %v766 = vld [vmem:[#allocation2 + $0x8] sm:$0xf]
        %v767 = vld [vmem:[#allocation2 + $0xc] sm:$0xf]
        %v768 = vld [vmem:[#allocation2 + $0x10] sm:$0xf]
        %v769 = vld [vmem:[#allocation2 + $0x14] sm:$0xf]
        %v770 = vld [vmem:[#allocation2 + $0x18] sm:$0xf]
        %v771 = vld [vmem:[#allocation2 + $0x1c] sm:$0xf]
        %v772 = vld [vmem:[#allocation2 + $0x20] sm:$0xf]
        %v773 = vld [vmem:[#allocation2 + $0x24] sm:$0xf]
        %v774 = vld [vmem:[#allocation2 + $0x28] sm:$0xf]
        %v775 = vld [vmem:[#allocation2 + $0x2c] sm:$0xf]
        %v776 = vld [vmem:[#allocation2 + $0x30] sm:$0xf]
        %v777 = vld [vmem:[#allocation2 + $0x34] sm:$0xf]
        %v778 = vld [vmem:[#allocation2 + $0x38] sm:$0xf]
        %v779 = vld [vmem:[#allocation2 + $0x3c] sm:$0xf]
        %v780 = vld [vmem:[%s7] sm:$0x1]
        %v782 = vlaneseq
        %v783 = vshrl.u32 %v782, 7
        %v784 = vsub.s32 0, %v783
        %v785 = vrot.slane %v780, %v784
        %v803 = vunpack.c.l.b16 %v764
        %v804 = vunpack.c.l.b16 %v765
        %v805 = vunpack.c.l.b16 %v766
        %v806 = vunpack.c.l.b16 %v767
        %v807 = vunpack.c.l.b16 %v768
        %v808 = vunpack.c.l.b16 %v769
        %v809 = vunpack.c.l.b16 %v770
        %v810 = vunpack.c.l.b16 %v771
        %v811 = vunpack.c.l.b16 %v772
        %v812 = vunpack.c.l.b16 %v773
        %v813 = vunpack.c.l.b16 %v774
        %v814 = vunpack.c.l.b16 %v775
        %v815 = vunpack.c.l.b16 %v776
        %v816 = vunpack.c.l.b16 %v777
        %v817 = vunpack.c.l.b16 %v778
        %v818 = vunpack.c.l.b16 %v779
        %v819 = vpack.c.b16 %v804, %v803
        %v820 = vpack.c.b16 %v806, %v805
        %v821 = vpack.c.b16 %v808, %v807
        %v822 = vpack.c.b16 %v810, %v809
        %v823 = vpack.c.b16 %v812, %v811
        %v824 = vpack.c.b16 %v814, %v813
        %v825 = vpack.c.b16 %v816, %v815
        %v826 = vpack.c.b16 %v818, %v817
        %835 = vmatprep.subr.bf16.mxu0 0
        %836 = vmatpush1.bf16.msra.mxu0 %v819
        %837 = vmatprep.subr.bf16.mxu0 0
        %838 = vmatpush1.bf16.msra.mxu0 %v820
        %839 = vmatprep.subr.bf16.mxu0 0
        %840 = vmatpush1.bf16.msra.mxu0 %v821
        %841 = vmatprep.subr.bf16.mxu0 0
        %842 = vmatpush1.bf16.msra.mxu0 %v822
        %843 = vmatprep.subr.bf16.mxu0 0
        %844 = vmatpush1.bf16.msra.mxu0 %v823
        %845 = vmatprep.subr.bf16.mxu0 0
        %846 = vmatpush1.bf16.msra.mxu0 %v824
        %847 = vmatprep.subr.bf16.mxu0 0
        %848 = vmatpush1.bf16.msra.mxu0 %v825
        %849 = vmatprep.subr.bf16.mxu0 0
        %850 = vmatpush1.bf16.msra.mxu0 %v826
        %851 = vmatprep.subr.bf16.mxu0 0
        %852 = vmatpush1.bf16.msra.mxu0 0
        %853 = vmatprep.subr.bf16.mxu0 0
        %854 = vmatpush1.bf16.msra.mxu0 0
        %855 = vmatprep.subr.bf16.mxu0 0
        %856 = vmatpush1.bf16.msra.mxu0 0
        %857 = vmatprep.subr.bf16.mxu0 0
        %858 = vmatpush1.bf16.msra.mxu0 0
        %859 = vmatprep.subr.bf16.mxu0 0
        %860 = vmatpush1.bf16.msra.mxu0 0
        %861 = vmatprep.subr.bf16.mxu0 0
        %862 = vmatpush1.bf16.msra.mxu0 0
        %863 = vmatprep.subr.bf16.mxu0 0
        %864 = vmatpush1.bf16.msra.mxu0 0
        %865 = vmatprep.subr.bf16.mxu0 0
        %866 = vmatpush1.bf16.msra.mxu0 0
        %867 = vmatprep.mubr.bf16.mxu0 0
        %868 = vmatmul.mubr.bf16.gmra.mrb[0].mxu0 %v762
        %v869 = vpop.f32.mrb[0].mxu0
        %v870 = vadd.f32 %v785, %v869
        %v871 = vpop.f32.mrb[0].mxu0
        %v872 = vpop.f32.mrb[0].mxu0
        %v873 = vadd.f32 %v785, %v872
        %v874 = vpop.f32.mrb[0].mxu0
        %875 = vmatprep.mubr.bf16.mxu0 0
        %876 = vmatmul.mubr.bf16.gmra.mrb[0].mxu0 %v763
        %v877 = vpop.f32.mrb[0].mxu0
        %v878 = vadd.f32 %v785, %v877
        %v879 = vpop.f32.mrb[0].mxu0
        %v880 = vpop.f32.mrb[0].mxu0
        %v881 = vadd.f32 %v785, %v880
        %v882 = vpop.f32.mrb[0].mxu0
        %883 = vdwg.mxu0
        %884 = vst [vmem:[%s334] sm:$0xff] %v870
        %885 = vst [vmem:[%s334 + $0x8] sm:$0xff] %v873
        %886 = vst [vmem:[%s334 + $0x10] sm:$0xff] %v878
        %887 = vst [vmem:[%s334 + $0x18] sm:$0xff] %v881
        %s888 = sand.u32 %s209, 1
        %s889 = scalar_lea.sflag [#allocation4], %s888
        %s890 = sand.u32 %s209, 1
        %s891 = smul.addr %s890, 32
        %s892 = scalar_lea.vmem [#allocation5], %s891
        // Predicated region
        $region57: #{gnn_block_forward.1} parent=51 // pred_check
          %p893 = pneg %p219
        $region58: #{gnn_block_forward.1} parent=51 // pred_check_branch
          %895 = sbr.rel (%p893) target = $region60
        $region59: #{gnn_block_forward.1} parent=51 // pred_region
          %s896 = smul.u32 2, %s23
          %s898 = ssub.s32 512, 512
          %899 = vsyncadd %s889, %s898
          %s900 = smul.addr %s896, 2
          %s901 = smul.addr %s900, 128
          %s902 = scalar_lea.hbm %s8, %s901
          %s903 = sshll.u32 %s892, 4
          %s904 = int_to_ptr.vmem [resolvable:$true] %s903
          %909 = dma.vmem_to_hbm [thread:$0]  %s904, 512, %s902, %s889, 128, 128, 8
        $region60: #{gnn_block_forward.1} parent=51 // pred_fallthru
          _
      $region52: #{gnn_block_forward.1} parent=5 // pred_fallthru
        _
      %p910 = scmp.le.s32.totalorder 2, %s18
      // Predicated region
      $region61: #{gnn_block_forward.1} parent=5 // pred_check
        %p911 = pneg %p910
      $region62: #{gnn_block_forward.1} parent=5 // pred_check_branch
        %913 = sbr.rel (%p911) target = $region64
      $region63: #{gnn_block_forward.1} parent=5 // pred_region
        %s914 = ssub.s32 %s18, 2
        // Predicated region
        $region65: #{gnn_block_forward.1} parent=63 // pred_check
          %p915 = pneg %p225
        $region66: #{gnn_block_forward.1} parent=63 // pred_check_branch
          %917 = sbr.rel (%p915) target = $region68
        $region67: #{gnn_block_forward.1} parent=63 // pred_region
          %s918 = sand.u32 %s210, 1
          %s919 = scalar_lea.sflag [#allocation4], %s918
          %s920 = sand.u32 %s210, 1
          %s921 = smul.addr %s920, 32
          %s922 = scalar_lea.vmem [#allocation5], %s921
          %923 = dma.done %s919, 512
        $region68: #{gnn_block_forward.1} parent=63 // pred_fallthru
          _
      $region64: #{gnn_block_forward.1} parent=5 // pred_fallthru
        _
    $region6: #{gnn_block_forward.1} parent=1 // loop_footer
      %s22 = sadd.s32 1, %s18
    $region7: #{gnn_block_forward.1} parent=1 // loop_footer_branch
      %17 = sbr.rel target = $region3
    $region8: #{gnn_block_forward.1} parent=1 // loop_exit
      _
    %924 = vsyncpa [#allocation3], 1
    %s925 = scalar_lea.sflag [#allocation3], 1
    %926 = vsyncpa %s925, 1
    %927 = vsyncpa [#allocation4], 1
    %s928 = scalar_lea.sflag [#allocation4], 1
    %929 = vsyncpa %s928, 1

</llo_original>
